<compile_context>
chip_gen: v7x
topology: tpu7x:2x2x1
jax: 0.10.0
libtpu: 0.0.40
codegen_flags: <defaults>
</compile_context>

<pallas_src>
import math

import jax
import jax.numpy as jnp
from jax.experimental import pallas as pl
from jax.experimental.pallas import tpu as pltpu


def _patch_proj_kernel(x_ref, w_ref, b_ref, o_ref):
    # x_ref: (TMr, G*K) bf16  -- G packed tokens per row (streamed M-tile)
    # w_ref: (G*K, G*E) bf16  -- block-diagonal replicated conv weight (resident)
    # b_ref: (1,   G*E) f32   -- bias tiled G times (resident)
    # o_ref: (TMr, G*E)       -- G token embeddings per row (lane-dense store)
    acc = jnp.dot(x_ref[...], w_ref[...], preferred_element_type=jnp.float32)
    o_ref[...] = (acc + b_ref[...]).astype(o_ref.dtype)


def _vmem_capacity_bytes():
    """Physical VMEM of the current TPU generation (fallback: v7x's 64 MiB)."""
    try:
        info = pltpu.get_tpu_info()
        for attr in ("vmem_capacity_bytes", "vmem_bytes", "vmem_size_bytes"):
            v = getattr(info, attr, None)
            if v:
                return int(v)
    except Exception:
        pass
    return 64 << 20


def _round_up(v, m):
    return ((v + m - 1) // m) * m


def patch_embed(x, weight, bias, patch_size=4, *,
                tokens_per_tile=32768, max_pack=8, out_dtype=jnp.float32):
    """Forward pass of PatchEmbed (norm_layer=None -> Identity).

    Args:
      x:      (B, C, H, W) float32  (NCHW, same as PyTorch)
      weight: (E, C, p, p) float32  (PyTorch Conv2d weight layout)
      bias:   (E,)         float32
    Returns:
      (tokens, Hp, Wp) where tokens is (B, Hp*Wp, E) of dtype `out_dtype`.
    """
    B, C, H, W = x.shape
    p = patch_size
    E = weight.shape[0]
    K = C * p * p

    # Pad bottom/right so H, W are divisible by the patch size (F.pad zeros).
    pad_h = (-H) % p
    pad_w = (-W) % p
    if pad_h or pad_w:
        x = jnp.pad(x, ((0, 0), (0, 0), (0, pad_h), (0, pad_w)))
    Hp, Wp = (H + pad_h) // p, (W + pad_w) // p
    M = B * Hp * Wp

    # Token-packing factor: G tokens per packed row so the output row width
    # G*E hits dense 128-lane stores.  Capped so replicated-weight FLOP waste
    # stays far from v5e's compute/bandwidth crossover (keeps us HBM-bound).
    G = max(1, min(128 // math.gcd(E, 128), max_pack))
    pad_m = (-M) % G
    Mr = (M + pad_m) // G
    Gk, Ge = G * K, G * E

    # Single fused pre-pass over x: patch extraction flattened in (c, kh, kw)
    # order (matches the Conv2d weight flattening), bf16 cast and G-group
    # padding in one producer chain -> one XLA fusion over x, fusible into the
    # Pallas input DMA via allow_input_fusion where legal.
    xp = x.reshape(B, C, Hp, p, Wp, p)
    xp = jnp.transpose(xp, (0, 2, 4, 1, 3, 5)).reshape(M, K).astype(jnp.bfloat16)
    if pad_m:
        # Padded rows produce bias-only garbage; they are sliced off below and
        # must never be read from the raw (Mr, Ge) kernel output directly.
        xp = jnp.pad(xp, ((0, pad_m), (0, 0)))
    xg = xp.reshape(Mr, Gk)                         # free row-major view

    # Block-diagonal replicated weight: row segment g of a packed row (token g
    # of the group) only feeds output columns [g*E, (g+1)*E).  Tiny & resident.
    w2 = weight.reshape(E, K).T.astype(jnp.bfloat16)                 # (K, E)
    w_bd = jnp.kron(jnp.eye(G, dtype=jnp.bfloat16), w2)              # (Gk, Ge)
    b_t = jnp.tile(bias.astype(jnp.float32), (G,)).reshape(1, Ge)    # (1, Ge)

    # ---- generation-aware M-tiling -----------------------------------------
    out_itemsize = jnp.dtype(out_dtype).itemsize
    row_in = Gk * 2                               # bf16 packed-patch row
    row_out = Ge * out_itemsize                   # output row
    resident = Gk * Ge * 2 + Ge * 4               # weight + bias (VMEM resident)

    vmem_cap = _vmem_capacity_bytes()
    # Budget ~60% of physical VMEM for the double-buffered in+out streams.
    budget = max(4 << 20, int(0.6 * vmem_cap) - resident)
    tile_rows = budget // (2 * (row_in + row_out))
    tile_rows = min(tile_rows, max(8, tokens_per_tile // G))
    tile_rows = max(8, (tile_rows // 8) * 8)

    if Mr > tile_rows:
        tmr = tile_rows
    elif Mr >= 16:
        # Force >=2 grid blocks so v7x's two TensorCores both get work.
        tmr = min(tile_rows, _round_up(pl.cdiv(Mr, 2), 8))
    else:
        tmr = Mr                                  # single full-extent block
    nblk = pl.cdiv(Mr, tmr)

    # Raise the scoped-VMEM limit to what the chosen tiles actually need
    # (default scoped limit is 16/32 MiB, well below physical on every gen).
    needed = resident + 2 * tmr * (row_in + row_out) + (2 << 20)
    vmem_limit = min(int(0.8 * vmem_cap), max(32 << 20, needed + (4 << 20)))

    # Executed MXU flops include the G-fold replication; bytes are the kernel's
    # own HBM traffic (the patch-extraction pre-pass is a separate fusion
    # unless allow_input_fusion folds it into the input DMA).
    cost = pl.CostEstimate(
        flops=2 * Mr * Gk * Ge,
        transcendentals=0,
        bytes_accessed=xg.size * 2 + w_bd.size * 2 + b_t.size * 4
        + Mr * Ge * out_itemsize,
    )

    out = pl.pallas_call(
        _patch_proj_kernel,
        out_shape=jax.ShapeDtypeStruct((Mr, Ge), out_dtype),
        grid_spec=pltpu.PrefetchScalarGridSpec(
            num_scalar_prefetch=0,
            grid=(nblk,),
            in_specs=[
                pl.BlockSpec((tmr, Gk), lambda i: (i, 0)),   # streamed patches
                pl.BlockSpec((Gk, Ge), lambda i: (0, 0)),    # resident weight
                pl.BlockSpec((1, Ge), lambda i: (0, 0)),     # resident bias
            ],
            out_specs=pl.BlockSpec((tmr, Ge), lambda i: (i, 0)),
        ),
        compiler_params=pltpu.CompilerParams(
            dimension_semantics=("parallel",),               # 2 TCs on v7x
            allow_input_fusion=[True, False, False],         # fold pre-pass
            vmem_limit_bytes=vmem_limit,
        ),
        cost_estimate=cost,
    )(xg, w_bd, b_t)

    # (Mr, G*E) -> (M, E) is a free row-major view; drop G-padding rows.
    tokens = out.reshape(Mr * G, E)[:M].reshape(B, Hp * Wp, E)
    # norm_layer is None in the module -> nn.Identity, nothing to do.
    return tokens, Hp, Wp


def _reference(x, weight, bias, patch_size=4, cast_bf16=False):
    """Plain-JAX reference (conv as dot). cast_bf16 mirrors the kernel inputs."""
    B, C, H, W = x.shape
    p = patch_size
    E = weight.shape[0]
    pad_h = (-H) % p
    pad_w = (-W) % p
    if pad_h or pad_w:
        x = jnp.pad(x, ((0, 0), (0, 0), (0, pad_h), (0, pad_w)))
    Hp, Wp = (H + pad_h) // p, (W + pad_w) // p
    xp = x.reshape(B, C, Hp, p, Wp, p)
    xp = jnp.transpose(xp, (0, 2, 4, 1, 3, 5)).reshape(B * Hp * Wp, C * p * p)
    w2 = weight.reshape(E, -1).T
    if cast_bf16:
        xp = xp.astype(jnp.bfloat16).astype(jnp.float32)
        w2 = w2.astype(jnp.bfloat16).astype(jnp.float32)
    out = jnp.dot(xp, w2, precision=jax.lax.Precision.HIGHEST) + bias[None, :]
    return out.reshape(B, Hp * Wp, E), Hp, Wp


if __name__ == "__main__":
    B, C, patch, embed_dim = 2, 4, 4, 32

    key = jax.random.PRNGKey(0)
    kx, kw, kb = jax.random.split(key, 3)
    weight = jax.random.normal(kw, (embed_dim, C, patch, patch), dtype=jnp.float32) * 0.02
    bias = jax.random.normal(kb, (embed_dim,), dtype=jnp.float32) * 0.02

    # Case 1: evenly divisible spatial dims.
    x = jax.random.normal(kx, (B, C, 16, 16), dtype=jnp.float32)
    tokens, Hp, Wp = patch_embed(x, weight, bias, patch_size=patch)
    tokens = jax.block_until_ready(tokens)
    assert tokens.shape == (B, (16 // patch) * (16 // patch), embed_dim), tokens.shape
    assert tokens.dtype == jnp.float32
    ref_b, rHp, rWp = _reference(x, weight, bias, patch_size=patch, cast_bf16=True)
    assert (Hp, Wp) == (rHp, rWp)
    # Tight check vs. a reference that mirrors the kernel's bf16-input math.
    assert jnp.allclose(tokens, ref_b, atol=1e-4, rtol=1e-4)
    # Loose check vs. true f32 conv semantics (slack is bf16 input rounding).
    ref_f, _, _ = _reference(x, weight, bias, patch_size=patch, cast_bf16=False)
    assert jnp.allclose(tokens, ref_f, atol=2e-2, rtol=2e-2)

    # Case 2: non-divisible spatial dims exercise the F.pad path + token padding.
    x2 = jax.random.normal(kx, (B, C, 18, 18), dtype=jnp.float32)
    tokens2, Hp2, Wp2 = patch_embed(x2, weight, bias, patch_size=patch)
    tokens2 = jax.block_until_ready(tokens2)
    ref2, rHp2, rWp2 = _reference(x2, weight, bias, patch_size=patch, cast_bf16=True)
    assert (Hp2, Wp2) == (rHp2, rWp2) == (5, 5)
    assert tokens2.shape == (B, Hp2 * Wp2, embed_dim), tokens2.shape
    assert jnp.allclose(tokens2, ref2, atol=1e-4, rtol=1e-4)

    # Case 3: optional bf16 token output (downstream-permitting bandwidth saver).
    tokens3, _, _ = patch_embed(x, weight, bias, patch_size=patch,
                                out_dtype=jnp.bfloat16)
    tokens3 = jax.block_until_ready(tokens3)
    assert tokens3.dtype == jnp.bfloat16
    assert jnp.allclose(tokens3.astype(jnp.float32), ref_b, atol=3e-2, rtol=3e-2)

    print("KERNEL_OK")
</pallas_src>

<mosaic_0001>
module attributes {stable_mosaic.version = 11 : i64} {
  func.func @_patch_proj_kernel(%arg0: i32, %arg1: memref<8x256xbf16, #tpu.memory_space<vmem>>, %arg2: memref<256x128xbf16, #tpu.memory_space<vmem>>, %arg3: memref<1x128xf32, #tpu.memory_space<vmem>>, %arg4: memref<8x128xf32, #tpu.memory_space<vmem>>) attributes {dimension_semantics = [#tpu.dimension_semantics<parallel>], iteration_bounds = array<i64: 1>, scalar_prefetch = 0 : i64, scratch_operands = 0 : i64, tpu.core_type = #tpu.core_type<tc>, window_params = [{transform_indices = @transform_0, window_bounds = array<i64: 8, 256>}, {pipeline_mode = #tpu.pipeline_mode<synchronous>, transform_indices = @transform_1, window_bounds = array<i64: 256, 128>}, {pipeline_mode = #tpu.pipeline_mode<synchronous>, transform_indices = @transform_2, window_bounds = array<i64: 1, 128>}, {transform_indices = @transform_3, window_bounds = array<i64: 8, 128>}]} {
    %c0 = arith.constant 0 : index
    %c0_0 = arith.constant 0 : index
    %0 = vector.load %arg1[%c0, %c0_0] : memref<8x256xbf16, #tpu.memory_space<vmem>>, vector<8x256xbf16>
    %c0_1 = arith.constant 0 : index
    %c0_2 = arith.constant 0 : index
    %1 = vector.load %arg2[%c0_1, %c0_2] : memref<256x128xbf16, #tpu.memory_space<vmem>>, vector<256x128xbf16>
    %cst = arith.constant dense<0.000000e+00> : vector<8x128xf32>
    %2 = tpu.matmul %0, %1, %cst {dimension_numbers = #tpu.dot_dimension_numbers<[1], [0], [0], [1], [0, 0, 1, 1], [], []>} : vector<8x256xbf16>, vector<256x128xbf16>, vector<8x128xf32> -> vector<8x128xf32>
    %c0_3 = arith.constant 0 : index
    %c0_4 = arith.constant 0 : index
    %3 = vector.load %arg3[%c0_3, %c0_4] : memref<1x128xf32, #tpu.memory_space<vmem>>, vector<1x128xf32>
    %4 = vector.broadcast %3 : vector<1x128xf32> to vector<8x128xf32>
    %5 = arith.addf %2, %4 : vector<8x128xf32>
    %c0_5 = arith.constant 0 : index
    %c0_6 = arith.constant 0 : index
    %6 = vector.load %arg4[%c0_5, %c0_6] : memref<8x128xf32, #tpu.memory_space<vmem>>, vector<8x128xf32>
    tpu.vector_store %arg4[%c0_5, %c0_6], %5 {strides = array<i32>} : memref<8x128xf32, #tpu.memory_space<vmem>>, vector<8x128xf32>,
    return
  }
  func.func @transform_0(%arg0: i32) -> (i32, i32) {
    %c0_i32 = arith.constant 0 : i32
    %c0_i32_0 = arith.constant 0 : i32
    return %arg0, %c0_i32 : i32, i32
  }
  func.func @transform_1(%arg0: i32) -> (i32, i32) {
    %c0_i32 = arith.constant 0 : i32
    %c0_i32_0 = arith.constant 0 : i32
    %c0_i32_1 = arith.constant 0 : i32
    return %c0_i32, %c0_i32_0 : i32, i32
  }
  func.func @transform_2(%arg0: i32) -> (i32, i32) {
    %c0_i32 = arith.constant 0 : i32
    %c0_i32_0 = arith.constant 0 : i32
    %c0_i32_1 = arith.constant 0 : i32
    return %c0_i32, %c0_i32_0 : i32, i32
  }
  func.func @transform_3(%arg0: i32) -> (i32, i32) {
    %c0_i32 = arith.constant 0 : i32
    %c0_i32_0 = arith.constant 0 : i32
    return %arg0, %c0_i32 : i32, i32
  }
}

</mosaic_0001>

<llo_original>
// kernel: tpu_custom_call.1
$region0: #{tpu_custom_call.1}
  #allocation0 [shape = 'u32[]', space=smem, size = 0x4, offset = 0x4, fixed_abs, tag = 'smem constant byte address 0x4 - core index']
  #allocation1 [shape = 'u32[144,128]{1,0:T(1,128)}', space=vmem, size = 0x12000, scoped, tag = 'internal scratch']
  %s0 = inlined_call_operand.hbm [shape: bf16[8,256], index: 0, kind: input, shape index: {}]
  %s1 = inlined_call_operand.hbm [shape: bf16[256,128], index: 1, kind: input, shape index: {}]
  %s2 = inlined_call_operand.vmem [shape: f32[1,128], index: 2, kind: input, shape index: {}]
  %s3 = inlined_call_operand.hbm [shape: f32[8,128], index: 3, kind: output, shape index: {}]
  %s4 = sld [smem:[#allocation0]]
  $region30: #{tpu_custom_call.1} parent=0
    _
  %s6 = ssub.s32 1, %s4
  %s7 = scalar_select 0, %s6, %s4
  $region1: #{tpu_custom_call.1} parent=0
    #allocation2 [shape = 'u8[4096]{0}', space=vmem, size = 0x1000, scoped, tag = 'input window, operand 0, single buffered']
    #allocation3 [shape = 's32[1]{0}', space=sflag, size = 0x4, scoped, tag = 'scoped memory for tpu_custom_call.1']
    #allocation4 [shape = 's32[1]{0}', space=sflag, size = 0x4, scoped, tag = 'scoped memory for tpu_custom_call.1']
    #allocation5 [shape = 'u8[65536]{0}', space=vmem, size = 0x10000, scoped, tag = 'input window, operand 1, single buffered']
    #allocation6 [shape = 's32[1]{0}', space=sflag, size = 0x4, scoped, tag = 'scoped memory for tpu_custom_call.1']
    #allocation7 [shape = 'u8[4096]{0}', space=vmem, size = 0x1000, scoped, tag = 'output window, operand 0, single buffered']
    %8 = vsyncpa [#allocation3], 0
    %9 = vsyncpa [#allocation6], 0
    %10 = vsyncpa [#allocation4], 0
    // Predicated region
    $region2: #{tpu_custom_call.1} parent=1 // pred_check
      _
    $region3: #{tpu_custom_call.1} parent=1 // pred_check_branch
      %12 = sbr.rel (0) target = $region5
    $region4: #{tpu_custom_call.1} parent=1 // pred_region
      %s14 = ssub.s32 128, 128
      %15 = vsyncadd [#allocation3], %s14
      %s17 = sshll.u32 [#allocation2], 4
      %s18 = int_to_ptr.vmem [resolvable:$true] %s17
      %20 = dma.hbm_to_vmem [thread:$0]  %s0, 128, %s18, [#allocation3]
    $region5: #{tpu_custom_call.1} parent=1 // pred_fallthru
      _
    // Predicated region
    $region6: #{tpu_custom_call.1} parent=1 // pred_check
      _
    $region7: #{tpu_custom_call.1} parent=1 // pred_check_branch
      %22 = sbr.rel (0) target = $region9
    $region8: #{tpu_custom_call.1} parent=1 // pred_region
      %s24 = ssub.s32 2048, 2048
      %25 = vsyncadd [#allocation6], %s24
      %s26 = sshll.u32 [#allocation5], 4
      %s27 = int_to_ptr.vmem [resolvable:$true] %s26
      %32 = dma.hbm_to_vmem [thread:$0]  %s1, 2048, %s27, [#allocation6], 64, 64, 4
    $region9: #{tpu_custom_call.1} parent=1 // pred_fallthru
      _
    // Predicated region
    $region10: #{tpu_custom_call.1} parent=1 // pred_check
      _
    $region11: #{tpu_custom_call.1} parent=1 // pred_check_branch
      %34 = sbr.rel (0) target = $region13
    $region12: #{tpu_custom_call.1} parent=1 // pred_region
      _
    $region13: #{tpu_custom_call.1} parent=1 // pred_fallthru
      _
    // Predicated region
    $region14: #{tpu_custom_call.1} parent=1 // pred_check
      _
    $region15: #{tpu_custom_call.1} parent=1 // pred_check_branch
      %36 = sbr.rel (0) target = $region17
    $region16: #{tpu_custom_call.1} parent=1 // pred_region
      %37 = dma.done [#allocation3], 128
    $region17: #{tpu_custom_call.1} parent=1 // pred_fallthru
      _
    // Predicated region
    $region18: #{tpu_custom_call.1} parent=1 // pred_check
      _
    $region19: #{tpu_custom_call.1} parent=1 // pred_check_branch
      %39 = sbr.rel (0) target = $region21
    $region20: #{tpu_custom_call.1} parent=1 // pred_region
      %40 = dma.done [#allocation6], 2048
    $region21: #{tpu_custom_call.1} parent=1 // pred_fallthru
      _
    %v42 = vld [vmem:[#allocation2] sm:$0xff]
    %v43 = vld [vmem:[#allocation5] sm:$0xf]
    %v44 = vld [vmem:[#allocation5 + $0x4] sm:$0xf]
    %v45 = vld [vmem:[#allocation5 + $0x8] sm:$0xf]
    %v46 = vld [vmem:[#allocation5 + $0xc] sm:$0xf]
    %v47 = vld [vmem:[#allocation5 + $0x10] sm:$0xf]
    %v48 = vld [vmem:[#allocation5 + $0x14] sm:$0xf]
    %v49 = vld [vmem:[#allocation5 + $0x18] sm:$0xf]
    %v50 = vld [vmem:[#allocation5 + $0x1c] sm:$0xf]
    %v51 = vld [vmem:[#allocation5 + $0x20] sm:$0xf]
    %v52 = vld [vmem:[#allocation5 + $0x24] sm:$0xf]
    %v53 = vld [vmem:[#allocation5 + $0x28] sm:$0xf]
    %v54 = vld [vmem:[#allocation5 + $0x2c] sm:$0xf]
    %v55 = vld [vmem:[#allocation5 + $0x30] sm:$0xf]
    %v56 = vld [vmem:[#allocation5 + $0x34] sm:$0xf]
    %v57 = vld [vmem:[#allocation5 + $0x38] sm:$0xf]
    %v58 = vld [vmem:[#allocation5 + $0x3c] sm:$0xf]
    %v59 = vld [vmem:[#allocation5 + $0x40] sm:$0xf]
    %v60 = vld [vmem:[#allocation5 + $0x44] sm:$0xf]
    %v61 = vld [vmem:[#allocation5 + $0x48] sm:$0xf]
    %v62 = vld [vmem:[#allocation5 + $0x4c] sm:$0xf]
    %v63 = vld [vmem:[#allocation5 + $0x50] sm:$0xf]
    %v64 = vld [vmem:[#allocation5 + $0x54] sm:$0xf]
    %v65 = vld [vmem:[#allocation5 + $0x58] sm:$0xf]
    %v66 = vld [vmem:[#allocation5 + $0x5c] sm:$0xf]
    %v67 = vld [vmem:[#allocation5 + $0x60] sm:$0xf]
    %v68 = vld [vmem:[#allocation5 + $0x64] sm:$0xf]
    %v69 = vld [vmem:[#allocation5 + $0x68] sm:$0xf]
    %v70 = vld [vmem:[#allocation5 + $0x6c] sm:$0xf]
    %v71 = vld [vmem:[#allocation5 + $0x70] sm:$0xf]
    %v72 = vld [vmem:[#allocation5 + $0x74] sm:$0xf]
    %v73 = vld [vmem:[#allocation5 + $0x78] sm:$0xf]
    %v74 = vld [vmem:[#allocation5 + $0x7c] sm:$0xf]
    %v75 = vld [vmem:[%s2] sm:$0x1]
    %v77 = vlaneseq
    %v78 = vshrl.u32 %v77, 7
    %v79 = vsub.s32 0, %v78
    %v80 = vrot.slane %v75, %v79
    %v83 = vunpack.c.l.b16 %v42
    %v84 = vunpack.c.h.b16 %v42
    %v85 = vpack.c.b16 %v83, %v83
    %v86 = vpack.c.b16 %v84, %v84
    %v121 = vunpack.c.l.b16 %v43
    %v122 = vunpack.c.l.b16 %v44
    %v123 = vunpack.c.l.b16 %v45
    %v124 = vunpack.c.l.b16 %v46
    %v125 = vunpack.c.l.b16 %v47
    %v126 = vunpack.c.l.b16 %v48
    %v127 = vunpack.c.l.b16 %v49
    %v128 = vunpack.c.l.b16 %v50
    %v129 = vunpack.c.l.b16 %v51
    %v130 = vunpack.c.l.b16 %v52
    %v131 = vunpack.c.l.b16 %v53
    %v132 = vunpack.c.l.b16 %v54
    %v133 = vunpack.c.l.b16 %v55
    %v134 = vunpack.c.l.b16 %v56
    %v135 = vunpack.c.l.b16 %v57
    %v136 = vunpack.c.l.b16 %v58
    %v137 = vunpack.c.l.b16 %v59
    %v138 = vunpack.c.l.b16 %v60
    %v139 = vunpack.c.l.b16 %v61
    %v140 = vunpack.c.l.b16 %v62
    %v141 = vunpack.c.l.b16 %v63
    %v142 = vunpack.c.l.b16 %v64
    %v143 = vunpack.c.l.b16 %v65
    %v144 = vunpack.c.l.b16 %v66
    %v145 = vunpack.c.l.b16 %v67
    %v146 = vunpack.c.l.b16 %v68
    %v147 = vunpack.c.l.b16 %v69
    %v148 = vunpack.c.l.b16 %v70
    %v149 = vunpack.c.l.b16 %v71
    %v150 = vunpack.c.l.b16 %v72
    %v151 = vunpack.c.l.b16 %v73
    %v152 = vunpack.c.l.b16 %v74
    %v153 = vpack.c.b16 %v122, %v121
    %v154 = vpack.c.b16 %v124, %v123
    %v155 = vpack.c.b16 %v126, %v125
    %v156 = vpack.c.b16 %v128, %v127
    %v157 = vpack.c.b16 %v130, %v129
    %v158 = vpack.c.b16 %v132, %v131
    %v159 = vpack.c.b16 %v134, %v133
    %v160 = vpack.c.b16 %v136, %v135
    %v161 = vpack.c.b16 %v138, %v137
    %v162 = vpack.c.b16 %v140, %v139
    %v163 = vpack.c.b16 %v142, %v141
    %v164 = vpack.c.b16 %v144, %v143
    %v165 = vpack.c.b16 %v146, %v145
    %v166 = vpack.c.b16 %v148, %v147
    %v167 = vpack.c.b16 %v150, %v149
    %v168 = vpack.c.b16 %v152, %v151
    %185 = vmatprep.subr.bf16.mxu0 0
    %186 = vmatpush1.bf16.msra.mxu0 %v153
    %187 = vmatprep.subr.bf16.mxu0 0
    %188 = vmatpush1.bf16.msra.mxu0 %v154
    %189 = vmatprep.subr.bf16.mxu0 0
    %190 = vmatpush1.bf16.msra.mxu0 %v155
    %191 = vmatprep.subr.bf16.mxu0 0
    %192 = vmatpush1.bf16.msra.mxu0 %v156
    %193 = vmatprep.subr.bf16.mxu0 0
    %194 = vmatpush1.bf16.msra.mxu0 %v157
    %195 = vmatprep.subr.bf16.mxu0 0
    %196 = vmatpush1.bf16.msra.mxu0 %v158
    %197 = vmatprep.subr.bf16.mxu0 0
    %198 = vmatpush1.bf16.msra.mxu0 %v159
    %199 = vmatprep.subr.bf16.mxu0 0
    %200 = vmatpush1.bf16.msra.mxu0 %v160
    %201 = vmatprep.subr.bf16.mxu0 0
    %202 = vmatpush1.bf16.msra.mxu0 %v161
    %203 = vmatprep.subr.bf16.mxu0 0
    %204 = vmatpush1.bf16.msra.mxu0 %v162
    %205 = vmatprep.subr.bf16.mxu0 0
    %206 = vmatpush1.bf16.msra.mxu0 %v163
    %207 = vmatprep.subr.bf16.mxu0 0
    %208 = vmatpush1.bf16.msra.mxu0 %v164
    %209 = vmatprep.subr.bf16.mxu0 0
    %210 = vmatpush1.bf16.msra.mxu0 %v165
    %211 = vmatprep.subr.bf16.mxu0 0
    %212 = vmatpush1.bf16.msra.mxu0 %v166
    %213 = vmatprep.subr.bf16.mxu0 0
    %214 = vmatpush1.bf16.msra.mxu0 %v167
    %215 = vmatprep.subr.bf16.mxu0 0
    %216 = vmatpush1.bf16.msra.mxu0 %v168
    %217 = vmatprep.mubr.bf16.mxu0 %v86
    %218 = vmatmul.mubr.bf16.gmra.mrb[0].mxu0 %v85
    %v219 = vpop.f32.mrb[0].mxu0
    %v220 = vadd.f32 %v80, %v219
    %v221 = vpop.f32.mrb[0].mxu0
    %v222 = vpop.f32.mrb[0].mxu0
    %v223 = vpop.f32.mrb[0].mxu0
    %224 = vdwg.mxu0
    %225 = vst [vmem:[#allocation7] sm:$0xff] %v220
    // Predicated region
    $region22: #{tpu_custom_call.1} parent=1 // pred_check
      _
    $region23: #{tpu_custom_call.1} parent=1 // pred_check_branch
      %227 = sbr.rel (0) target = $region25
    $region24: #{tpu_custom_call.1} parent=1 // pred_region
      %s229 = ssub.s32 128, 128
      %230 = vsyncadd [#allocation4], %s229
      %s232 = sshll.u32 [#allocation7], 4
      %s233 = int_to_ptr.vmem [resolvable:$true] %s232
      %235 = dma.vmem_to_hbm [thread:$0]  %s233, 128, %s3, [#allocation4]
    $region25: #{tpu_custom_call.1} parent=1 // pred_fallthru
      _
    // Predicated region
    $region26: #{tpu_custom_call.1} parent=1 // pred_check
      _
    $region27: #{tpu_custom_call.1} parent=1 // pred_check_branch
      %237 = sbr.rel (0) target = $region29
    $region28: #{tpu_custom_call.1} parent=1 // pred_region
      %238 = dma.done [#allocation4], 128
    $region29: #{tpu_custom_call.1} parent=1 // pred_fallthru
      _
    %239 = vsyncpa [#allocation3], 1
    %240 = vsyncpa [#allocation6], 1
    %241 = vsyncpa [#allocation4], 1

</llo_original>
